<compile_context>
chip_gen: v5e
topology: v5e:2x2
jax: 0.10.0
libtpu: 0.0.40
codegen_flags: <defaults>
</compile_context>

<pallas_src>
import numpy as np
import jax
import jax.numpy as jnp
from jax.experimental import pallas as pl
from jax.experimental.pallas import tpu as pltpu


def dino_loss_kernel(scalars_ref, student_ref, teacher_ref, center_ref,
                     loss_part_ref, center_part_ref, q_scr, qsum_scr):
    """One (row-block i, student-crop v) grid step.

    scalars_ref (SMEM, (2,) f32): [1/student_temp, 1/teacher_temp(epoch)]
    student_ref: (1, tb, D)   crop-v student rows of this batch tile
    teacher_ref: (2, tb, D)   both teacher crops of this batch tile
                              (re-DMAed only when the row block changes)
    center_ref:  (1, D)
    loss_part_ref:   (1, 1, 128)  positive CE partial (accumulated over crops)
    center_part_ref: (1, 1, D)    partial teacher row-sum for the center EMA
    q_scr:    (2, tb, D) f32  teacher softmax, computed once per row block
    qsum_scr: (tb, D)    f32  q0 + q1
    """
    v = pl.program_id(1)
    inv_student_temp = scalars_ref[0]
    inv_teacher_temp = scalars_ref[1]

    # --- once per row block: teacher softmax + init of resident outputs ---
    @pl.when(v == 0)
    def _():
        teacher = teacher_ref[...].astype(jnp.float32)            # (2, tb, D)
        center_scaled = center_ref[...].astype(jnp.float32) * inv_teacher_temp
        t_logits = teacher * inv_teacher_temp - center_scaled
        t_max = jnp.max(t_logits, axis=-1, keepdims=True)
        t_exp = jnp.exp(t_logits - t_max)
        t_den = jnp.sum(t_exp, axis=-1, keepdims=True)            # (2, tb, 1)
        t_soft = t_exp * (1.0 / t_den)      # 2*tb exact reciprocals, then mul
        q_scr[...] = t_soft
        qsum_scr[...] = t_soft[0] + t_soft[1]
        # teacher row-sum of this block, for the (host-side) center EMA
        center_part_ref[...] = jnp.sum(
            teacher[0] + teacher[1], axis=0, keepdims=True
        ).reshape(center_part_ref.shape)
        loss_part_ref[...] = jnp.zeros_like(loss_part_ref)

    # --- student crop v: log_softmax (inputs may be bf16; upcast per tile) ---
    s_logits = student_ref[0].astype(jnp.float32) * inv_student_temp  # (tb, D)
    s_max = jnp.max(s_logits, axis=-1, keepdims=True)
    s_shift = s_logits - s_max
    s_lse = jnp.log(jnp.sum(jnp.exp(s_shift), axis=-1, keepdims=True))
    lp = s_shift - s_lse                                              # (tb, D)

    # collapsed pairwise CE: accumulate (q0 + q1) . lp_v ...
    loss_part_ref[...] += jnp.broadcast_to(jnp.sum(qsum_scr[...] * lp),
                                           loss_part_ref.shape)

    # ... and subtract the diagonal term q_iq . lp_v for v == iq (static index)
    @pl.when(v == 0)
    def _():
        loss_part_ref[...] -= jnp.broadcast_to(jnp.sum(q_scr[0] * lp),
                                               loss_part_ref.shape)

    @pl.when(v == 1)
    def _():
        loss_part_ref[...] -= jnp.broadcast_to(jnp.sum(q_scr[1] * lp),
                                               loss_part_ref.shape)


def _vmem_capacity_bytes():
    try:
        return int(pltpu.get_tpu_info().vmem_capacity_bytes)
    except Exception:
        return 64 * 1024 * 1024      # conservative default (v7x per-TC VMEM)


def _choose_block_rows(B, D, in_bytes, num_cores=2):
    """Largest sublane-aligned row block dividing B that (a) keeps the per-step
    working set inside a generation-aware VMEM budget and (b) leaves at least
    2*num_cores row blocks so the "parallel" axis can feed both v7x cores."""
    if B % 8 != 0:
        return B                     # only the full-extent block is legal
    budget = int(_vmem_capacity_bytes() * 0.45)
    # per-row bytes: double-buffered student (1 tile) + teacher (2 tiles) in
    # the input dtype, q/qsum scratch (3 f32 tiles), ~5 f32 tiles temporaries
    bytes_per_row = D * (in_bytes * (2 * 1 + 2 * 2) + 4 * (3 + 5))
    max_rows = max(8, (budget // bytes_per_row) // 8 * 8)
    tb = min(B, max_rows)
    min_blocks = min(2 * num_cores, B // 8)
    if min_blocks > 1:
        tb = min(tb, max(8, (B // min_blocks) // 8 * 8))
    while B % tb != 0:
        tb -= 8
    return max(tb, 8)


class DINOLossPallas:
    def __init__(self, out_dim, ncrops, warmup_teacher_temp, teacher_temp,
                 warmup_teacher_temp_epochs, nepochs,
                 student_temp=0.1, center_momentum=0.9, block_rows=None):
        self.student_temp = student_temp
        self.center_momentum = center_momentum
        self.ncrops = ncrops
        self.out_dim = out_dim
        self.block_rows = block_rows
        # matches register_buffer('center', torch.zeros(1, out_dim))
        self.center = jnp.zeros((1, out_dim), jnp.float32)
        self.teacher_temp_schedule = np.concatenate((
            np.linspace(warmup_teacher_temp, teacher_temp, warmup_teacher_temp_epochs),
            np.ones(nepochs - warmup_teacher_temp_epochs) * teacher_temp,
        ))

    def __call__(self, student_output, teacher_output, epoch, masks=None,
                 update_center=True):
        # TODO(synk): masks != None path of the PyTorch forward is not implemented.
        assert masks is None
        D = self.out_dim
        ncrops = self.ncrops
        B = teacher_output.shape[0] // 2
        assert teacher_output.shape == (2 * B, D)
        assert student_output.shape == (ncrops * B, D)

        temp = float(self.teacher_temp_schedule[epoch])
        scalars = jnp.array([1.0 / self.student_temp, 1.0 / temp], jnp.float32)

        # Host-side reshape (layout no-op): blocks slice the leading crop axis
        # and the per-crop batch axis only, never across (8,128) tiles.
        student = student_output.reshape(ncrops, B, D)
        teacher = teacher_output.reshape(2, B, D)

        in_bytes = jnp.dtype(student_output.dtype).itemsize
        tb = self.block_rows or _choose_block_rows(B, D, in_bytes)
        assert B % tb == 0 and (tb % 8 == 0 or tb == B)
        nblocks = B // tb
        n_terms = 2 * (ncrops - 1)
        vmem_limit = int(_vmem_capacity_bytes() * 0.85)

        loss_parts, center_parts = pl.pallas_call(
            dino_loss_kernel,
            out_shape=(
                jax.ShapeDtypeStruct((nblocks, 1, 128), jnp.float32),  # CE partials
                jax.ShapeDtypeStruct((nblocks, 1, D), jnp.float32),    # teacher sums
            ),
            grid=(nblocks, ncrops),                     # crop axis innermost
            in_specs=[
                pl.BlockSpec(memory_space=pltpu.MemorySpace.SMEM),     # scalars
                pl.BlockSpec((1, tb, D), lambda i, v: (v, i, 0)),      # student crop v
                pl.BlockSpec((2, tb, D), lambda i, v: (0, i, 0)),      # teacher (i only)
                pl.BlockSpec((1, D), lambda i, v: (0, 0)),             # center
            ],
            out_specs=(
                pl.BlockSpec((1, 1, 128), lambda i, v: (i, 0, 0)),
                pl.BlockSpec((1, 1, D), lambda i, v: (i, 0, 0)),
            ),
            scratch_shapes=[
                pltpu.VMEM((2, tb, D), jnp.float32),    # teacher softmax q0, q1
                pltpu.VMEM((tb, D), jnp.float32),       # q0 + q1
            ],
            compiler_params=pltpu.CompilerParams(
                dimension_semantics=("parallel", "arbitrary"),
                vmem_limit_bytes=vmem_limit,
            ),
        )(scalars, student, teacher, self.center)

        # Tiny JAX epilogue: reduce disjoint per-block partials, scale, negate once.
        loss = -jnp.sum(loss_parts[:, 0, 0]) / (B * n_terms)

        # Center EMA.
        # TODO(synk): dist.all_reduce / dist.get_world_size have no single-chip
        # Pallas equivalent; single-device semantics assumed (world_size == 1).
        batch_center = jnp.sum(center_parts[:, 0, :], axis=0, keepdims=True) / (2 * B)
        new_center = (self.center * self.center_momentum
                      + batch_center * (1.0 - self.center_momentum))
        if update_center:
            self.center = new_center
        return loss


def dino_loss_reference(student, teacher, center, student_temp, temp, ncrops):
    """Pure-JAX reference mirroring the PyTorch forward (masks=None)."""
    B = teacher.shape[0] // 2
    s = student / student_temp
    t = jax.nn.softmax((teacher - center) / temp, axis=-1)
    total, n = 0.0, 0
    for iq in range(2):
        q = t[iq * B:(iq + 1) * B]
        for v in range(ncrops):
            if v == iq:
                continue
            lp = jax.nn.log_softmax(s[v * B:(v + 1) * B], axis=-1)
            total = total + jnp.mean(jnp.sum(-q * lp, axis=-1))
            n += 1
    return total / n


if __name__ == "__main__":
    out_dim = 256    # multiple of 128 (lane axis)
    ncrops = 4
    B = 16           # per-crop batch size -> 2 row blocks of 8
    epoch = 0

    key = jax.random.PRNGKey(0)
    k_s, k_t = jax.random.split(key)
    student_f32 = jax.random.normal(k_s, (ncrops * B, out_dim), dtype=jnp.float32)
    teacher_f32 = jax.random.normal(k_t, (2 * B, out_dim), dtype=jnp.float32)

    # --- f32 path: tight check against the pure-JAX reference ---
    loss_mod = DINOLossPallas(
        out_dim=out_dim, ncrops=ncrops,
        warmup_teacher_temp=0.04, teacher_temp=0.07,
        warmup_teacher_temp_epochs=5, nepochs=10,
        student_temp=0.1, center_momentum=0.9)
    temp = float(loss_mod.teacher_temp_schedule[epoch])

    loss = jax.block_until_ready(loss_mod(student_f32, teacher_f32, epoch))
    new_center = jax.block_until_ready(loss_mod.center)

    ref_loss = dino_loss_reference(
        student_f32, teacher_f32, jnp.zeros((1, out_dim), jnp.float32),
        0.1, temp, ncrops)
    ref_center = (jnp.sum(teacher_f32, axis=0, keepdims=True)
                  / teacher_f32.shape[0] * 0.1)
    np.testing.assert_allclose(np.asarray(loss), np.asarray(ref_loss),
                               rtol=1e-4, atol=1e-4)
    np.testing.assert_allclose(np.asarray(new_center), np.asarray(ref_center),
                               rtol=1e-4, atol=1e-5)

    # --- bf16 path: halves DMA bytes (kernel upcasts per tile to f32) ---
    student_bf16 = student_f32.astype(jnp.bfloat16)
    teacher_bf16 = teacher_f32.astype(jnp.bfloat16)
    loss_mod_bf16 = DINOLossPallas(
        out_dim=out_dim, ncrops=ncrops,
        warmup_teacher_temp=0.04, teacher_temp=0.07,
        warmup_teacher_temp_epochs=5, nepochs=10,
        student_temp=0.1, center_momentum=0.9)
    loss_bf16 = jax.block_until_ready(loss_mod_bf16(student_bf16, teacher_bf16, epoch))
    ref_loss_bf16 = dino_loss_reference(
        student_bf16.astype(jnp.float32), teacher_bf16.astype(jnp.float32),
        jnp.zeros((1, out_dim), jnp.float32), 0.1, temp, ncrops)
    np.testing.assert_allclose(np.asarray(loss_bf16), np.asarray(ref_loss_bf16),
                               rtol=1e-3, atol=1e-3)

    print("KERNEL_OK")
</pallas_src>

<mosaic_0001>
module attributes {stable_mosaic.version = 11 : i64} {
  func.func @dino_loss_kernel(%arg0: i32, %arg1: i32, %arg2: memref<2xf32, #tpu.memory_space<smem>>, %arg3: memref<1x8x256xf32, #tpu.memory_space<vmem>>, %arg4: memref<2x8x256xf32, #tpu.memory_space<vmem>>, %arg5: memref<1x256xf32, #tpu.memory_space<vmem>>, %arg6: memref<1x1x128xf32, #tpu.memory_space<vmem>>, %arg7: memref<1x1x256xf32, #tpu.memory_space<vmem>>, %arg8: memref<2x8x256xf32, #tpu.memory_space<vmem>>, %arg9: memref<8x256xf32, #tpu.memory_space<vmem>>) attributes {dimension_semantics = [#tpu.dimension_semantics<parallel>, #tpu.dimension_semantics<arbitrary>], iteration_bounds = array<i64: 2, 4>, scalar_prefetch = 0 : i64, scratch_operands = 2 : i64, tpu.core_type = #tpu.core_type<tc>, window_params = [{transform_indices = @transform_0, window_bounds = array<i64: 2>}, {transform_indices = @transform_1, window_bounds = array<i64: 1, 8, 256>}, {transform_indices = @transform_2, window_bounds = array<i64: 2, 8, 256>}, {pipeline_mode = #tpu.pipeline_mode<synchronous>, transform_indices = @transform_3, window_bounds = array<i64: 1, 256>}, {transform_indices = @transform_4, window_bounds = array<i64: 1, 1, 128>}, {transform_indices = @transform_5, window_bounds = array<i64: 1, 1, 256>}]} {
    %c0 = arith.constant 0 : index
    %0 = memref.load %arg2[%c0] : memref<2xf32, #tpu.memory_space<smem>>
    %c1 = arith.constant 1 : index
    %1 = memref.load %arg2[%c1] : memref<2xf32, #tpu.memory_space<smem>>
    %c0_i32 = arith.constant 0 : i32
    %2 = arith.cmpi eq, %arg1, %c0_i32 : i32
    %3 = arith.extui %2 : i1 to i32
    %c0_i32_0 = arith.constant 0 : i32
    %4 = arith.cmpi ne, %3, %c0_i32_0 : i32
    scf.if %4 {
      %c0_17 = arith.constant 0 : index
      %c0_18 = arith.constant 0 : index
      %c0_19 = arith.constant 0 : index
      %35 = vector.load %arg4[%c0_17, %c0_18, %c0_19] : memref<2x8x256xf32, #tpu.memory_space<vmem>>, vector<2x8x256xf32>
      %c0_20 = arith.constant 0 : index
      %c0_21 = arith.constant 0 : index
      %36 = vector.load %arg5[%c0_20, %c0_21] : memref<1x256xf32, #tpu.memory_space<vmem>>, vector<1x256xf32>
      %37 = vector.broadcast %1 : f32 to vector<1x256xf32>
      %38 = arith.mulf %36, %37 : vector<1x256xf32>
      %39 = vector.broadcast %1 : f32 to vector<2x8x256xf32>
      %40 = arith.mulf %35, %39 : vector<2x8x256xf32>
      %41 = vector.shape_cast %38 : vector<1x256xf32> to vector<1x1x256xf32>
      %42 = vector.broadcast %41 : vector<1x1x256xf32> to vector<2x8x256xf32>
      %43 = arith.subf %40, %42 : vector<2x8x256xf32>
      %cst_22 = arith.constant dense<0xFF800000> : vector<2x8xf32>
      %44 = vector.multi_reduction <maximumf>, %43, %cst_22 [2] : vector<2x8x256xf32> to vector<2x8xf32>
      %45 = vector.shape_cast %44 : vector<2x8xf32> to vector<2x8x1xf32>
      %46 = vector.broadcast %45 : vector<2x8x1xf32> to vector<2x8x256xf32>
      %47 = arith.subf %43, %46 : vector<2x8x256xf32>
      %48 = math.exp %47 : vector<2x8x256xf32>
      %cst_23 = arith.constant dense<0.000000e+00> : vector<2x8xf32>
      %49 = vector.multi_reduction <add>, %48, %cst_23 [2] : vector<2x8x256xf32> to vector<2x8xf32>
      %50 = vector.shape_cast %49 : vector<2x8xf32> to vector<2x8x1xf32>
      %cst_24 = arith.constant 1.000000e+00 : f32
      %51 = vector.broadcast %cst_24 : f32 to vector<2x8x1xf32>
      %52 = arith.divf %51, %50 : vector<2x8x1xf32>
      %53 = vector.broadcast %52 : vector<2x8x1xf32> to vector<2x8x256xf32>
      %54 = arith.mulf %48, %53 : vector<2x8x256xf32>
      %c0_25 = arith.constant 0 : index
      %c0_26 = arith.constant 0 : index
      %c0_27 = arith.constant 0 : index
      %55 = vector.load %arg8[%c0_25, %c0_26, %c0_27] : memref<2x8x256xf32, #tpu.memory_space<vmem>>, vector<2x8x256xf32>
      tpu.vector_store %arg8[%c0_25, %c0_26, %c0_27], %54 {strides = array<i32>} : memref<2x8x256xf32, #tpu.memory_space<vmem>>, vector<2x8x256xf32>,
      %56 = vector.extract_strided_slice %54 {offsets = [0, 0, 0], sizes = [1, 8, 256], strides = [1, 1, 1]} : vector<2x8x256xf32> to vector<1x8x256xf32>
      %57 = vector.shape_cast %56 : vector<1x8x256xf32> to vector<8x256xf32>
      %58 = vector.extract_strided_slice %54 {offsets = [1, 0, 0], sizes = [1, 8, 256], strides = [1, 1, 1]} : vector<2x8x256xf32> to vector<1x8x256xf32>
      %59 = vector.shape_cast %58 : vector<1x8x256xf32> to vector<8x256xf32>
      %60 = arith.addf %57, %59 : vector<8x256xf32>
      %c0_28 = arith.constant 0 : index
      %c0_29 = arith.constant 0 : index
      %61 = vector.load %arg9[%c0_28, %c0_29] : memref<8x256xf32, #tpu.memory_space<vmem>>, vector<8x256xf32>
      tpu.vector_store %arg9[%c0_28, %c0_29], %60 {strides = array<i32>} : memref<8x256xf32, #tpu.memory_space<vmem>>, vector<8x256xf32>,
      %62 = vector.extract_strided_slice %35 {offsets = [0, 0, 0], sizes = [1, 8, 256], strides = [1, 1, 1]} : vector<2x8x256xf32> to vector<1x8x256xf32>
      %63 = vector.shape_cast %62 : vector<1x8x256xf32> to vector<8x256xf32>
      %64 = vector.extract_strided_slice %35 {offsets = [1, 0, 0], sizes = [1, 8, 256], strides = [1, 1, 1]} : vector<2x8x256xf32> to vector<1x8x256xf32>
      %65 = vector.shape_cast %64 : vector<1x8x256xf32> to vector<8x256xf32>
      %66 = arith.addf %63, %65 : vector<8x256xf32>
      %cst_30 = arith.constant dense<0.000000e+00> : vector<256xf32>
      %67 = vector.multi_reduction <add>, %66, %cst_30 [0] : vector<8x256xf32> to vector<256xf32>
      %68 = vector.shape_cast %67 : vector<256xf32> to vector<1x256xf32>
      %69 = vector.shape_cast %68 : vector<1x256xf32> to vector<1x1x256xf32>
      %c0_31 = arith.constant 0 : index
      %c0_32 = arith.constant 0 : index
      %c0_33 = arith.constant 0 : index
      %70 = vector.load %arg7[%c0_31, %c0_32, %c0_33] : memref<1x1x256xf32, #tpu.memory_space<vmem>>, vector<1x1x256xf32>
      tpu.vector_store %arg7[%c0_31, %c0_32, %c0_33], %69 {strides = array<i32>} : memref<1x1x256xf32, #tpu.memory_space<vmem>>, vector<1x1x256xf32>,
      %cst_34 = arith.constant 0.000000e+00 : f32
      %71 = vector.broadcast %cst_34 : f32 to vector<1x1x128xf32>
      %c0_35 = arith.constant 0 : index
      %c0_36 = arith.constant 0 : index
      %c0_37 = arith.constant 0 : index
      %72 = vector.load %arg6[%c0_35, %c0_36, %c0_37] : memref<1x1x128xf32, #tpu.memory_space<vmem>>, vector<1x1x128xf32>
      tpu.vector_store %arg6[%c0_35, %c0_36, %c0_37], %71 {strides = array<i32>} : memref<1x1x128xf32, #tpu.memory_space<vmem>>, vector<1x1x128xf32>,
    } else {
    }
    %c0_1 = arith.constant 0 : index
    %c0_2 = arith.constant 0 : index
    %c0_3 = arith.constant 0 : index
    %5 = vector.load %arg3[%c0_1, %c0_2, %c0_3] : memref<1x8x256xf32, #tpu.memory_space<vmem>>, vector<1x8x256xf32>
    %6 = vector.shape_cast %5 : vector<1x8x256xf32> to vector<8x256xf32>
    %7 = vector.broadcast %0 : f32 to vector<8x256xf32>
    %8 = arith.mulf %6, %7 : vector<8x256xf32>
    %cst = arith.constant dense<0xFF800000> : vector<8xf32>
    %9 = vector.multi_reduction <maximumf>, %8, %cst [1] : vector<8x256xf32> to vector<8xf32>
    %10 = vector.shape_cast %9 : vector<8xf32> to vector<8x1xf32>
    %11 = vector.broadcast %10 : vector<8x1xf32> to vector<8x256xf32>
    %12 = arith.subf %8, %11 : vector<8x256xf32>
    %13 = math.exp %12 : vector<8x256xf32>
    %cst_4 = arith.constant dense<0.000000e+00> : vector<8xf32>
    %14 = vector.multi_reduction <add>, %13, %cst_4 [1] : vector<8x256xf32> to vector<8xf32>
    %15 = vector.shape_cast %14 : vector<8xf32> to vector<8x1xf32>
    %16 = math.log %15 : vector<8x1xf32>
    %17 = vector.broadcast %16 : vector<8x1xf32> to vector<8x256xf32>
    %18 = arith.subf %12, %17 : vector<8x256xf32>
    %c0_5 = arith.constant 0 : index
    %c0_6 = arith.constant 0 : index
    %c0_7 = arith.constant 0 : index
    %19 = vector.load %arg6[%c0_5, %c0_6, %c0_7] : memref<1x1x128xf32, #tpu.memory_space<vmem>>, vector<1x1x128xf32>
    %c0_8 = arith.constant 0 : index
    %c0_9 = arith.constant 0 : index
    %20 = vector.load %arg9[%c0_8, %c0_9] : memref<8x256xf32, #tpu.memory_space<vmem>>, vector<8x256xf32>
    %21 = arith.mulf %20, %18 : vector<8x256xf32>
    %22 = vector.shape_cast %21 : vector<8x256xf32> to vector<1x8x256xf32>
    %cst_10 = arith.constant dense<0.000000e+00> : vector<1xf32>
    %23 = vector.multi_reduction <add>, %22, %cst_10 [1, 2] : vector<1x8x256xf32> to vector<1xf32>
    %24 = vector.shape_cast %23 : vector<1xf32> to vector<1x1x1xf32>
    %25 = vector.extract %24[0, 0, 0] : f32 from vector<1x1x1xf32>
    %26 = vector.broadcast %25 : f32 to vector<1x1x128xf32>
    %27 = arith.addf %19, %26 : vector<1x1x128xf32>
    %c0_11 = arith.constant 0 : index
    %c0_12 = arith.constant 0 : index
    %c0_13 = arith.constant 0 : index
    %28 = vector.load %arg6[%c0_11, %c0_12, %c0_13] : memref<1x1x128xf32, #tpu.memory_space<vmem>>, vector<1x1x128xf32>
    tpu.vector_store %arg6[%c0_11, %c0_12, %c0_13], %27 {strides = array<i32>} : memref<1x1x128xf32, #tpu.memory_space<vmem>>, vector<1x1x128xf32>,
    %c0_i32_14 = arith.constant 0 : i32
    %29 = arith.cmpi eq, %arg1, %c0_i32_14 : i32
    %30 = arith.extui %29 : i1 to i32
    %c0_i32_15 = arith.constant 0 : i32
    %31 = arith.cmpi ne, %30, %c0_i32_15 : i32
    scf.if %31 {
      %c0_17 = arith.constant 0 : index
      %c0_18 = arith.constant 0 : index
      %c0_19 = arith.constant 0 : index
      %35 = vector.load %arg6[%c0_17, %c0_18, %c0_19] : memref<1x1x128xf32, #tpu.memory_space<vmem>>, vector<1x1x128xf32>
      %c0_20 = arith.constant 0 : index
      %c0_21 = arith.constant 0 : index
      %c0_22 = arith.constant 0 : index
      %36 = vector.load %arg8[%c0_20, %c0_21, %c0_22] : memref<2x8x256xf32, #tpu.memory_space<vmem>>, vector<1x8x256xf32>
      %37 = vector.shape_cast %36 : vector<1x8x256xf32> to vector<8x256xf32>
      %38 = arith.mulf %37, %18 : vector<8x256xf32>
      %39 = vector.shape_cast %38 : vector<8x256xf32> to vector<1x8x256xf32>
      %cst_23 = arith.constant dense<0.000000e+00> : vector<1xf32>
      %40 = vector.multi_reduction <add>, %39, %cst_23 [1, 2] : vector<1x8x256xf32> to vector<1xf32>
      %41 = vector.shape_cast %40 : vector<1xf32> to vector<1x1x1xf32>
      %42 = vector.extract %41[0, 0, 0] : f32 from vector<1x1x1xf32>
      %43 = vector.broadcast %42 : f32 to vector<1x1x128xf32>
      %44 = arith.subf %35, %43 : vector<1x1x128xf32>
      %c0_24 = arith.constant 0 : index
      %c0_25 = arith.constant 0 : index
      %c0_26 = arith.constant 0 : index
      %45 = vector.load %arg6[%c0_24, %c0_25, %c0_26] : memref<1x1x128xf32, #tpu.memory_space<vmem>>, vector<1x1x128xf32>
      tpu.vector_store %arg6[%c0_24, %c0_25, %c0_26], %44 {strides = array<i32>} : memref<1x1x128xf32, #tpu.memory_space<vmem>>, vector<1x1x128xf32>,
    } else {
    }
    %c1_i32 = arith.constant 1 : i32
    %32 = arith.cmpi eq, %arg1, %c1_i32 : i32
    %33 = arith.extui %32 : i1 to i32
    %c0_i32_16 = arith.constant 0 : i32
    %34 = arith.cmpi ne, %33, %c0_i32_16 : i32
    scf.if %34 {
      %c0_17 = arith.constant 0 : index
      %c0_18 = arith.constant 0 : index
      %c0_19 = arith.constant 0 : index
      %35 = vector.load %arg6[%c0_17, %c0_18, %c0_19] : memref<1x1x128xf32, #tpu.memory_space<vmem>>, vector<1x1x128xf32>
      %c1_20 = arith.constant 1 : index
      %c0_21 = arith.constant 0 : index
      %c0_22 = arith.constant 0 : index
      %36 = vector.load %arg8[%c1_20, %c0_21, %c0_22] : memref<2x8x256xf32, #tpu.memory_space<vmem>>, vector<1x8x256xf32>
      %37 = vector.shape_cast %36 : vector<1x8x256xf32> to vector<8x256xf32>
      %38 = arith.mulf %37, %18 : vector<8x256xf32>
      %39 = vector.shape_cast %38 : vector<8x256xf32> to vector<1x8x256xf32>
      %cst_23 = arith.constant dense<0.000000e+00> : vector<1xf32>
      %40 = vector.multi_reduction <add>, %39, %cst_23 [1, 2] : vector<1x8x256xf32> to vector<1xf32>
      %41 = vector.shape_cast %40 : vector<1xf32> to vector<1x1x1xf32>
      %42 = vector.extract %41[0, 0, 0] : f32 from vector<1x1x1xf32>
      %43 = vector.broadcast %42 : f32 to vector<1x1x128xf32>
      %44 = arith.subf %35, %43 : vector<1x1x128xf32>
      %c0_24 = arith.constant 0 : index
      %c0_25 = arith.constant 0 : index
      %c0_26 = arith.constant 0 : index
      %45 = vector.load %arg6[%c0_24, %c0_25, %c0_26] : memref<1x1x128xf32, #tpu.memory_space<vmem>>, vector<1x1x128xf32>
      tpu.vector_store %arg6[%c0_24, %c0_25, %c0_26], %44 {strides = array<i32>} : memref<1x1x128xf32, #tpu.memory_space<vmem>>, vector<1x1x128xf32>,
    } else {
    }
    return
  }
  func.func @transform_0(%arg0: i32, %arg1: i32) -> i32 {
    %c0_i32 = arith.constant 0 : i32
    %c0_i32_0 = arith.constant 0 : i32
    return %c0_i32 : i32
  }
  func.func @transform_1(%arg0: i32, %arg1: i32) -> (i32, i32, i32) {
    %c0_i32 = arith.constant 0 : i32
    %c0_i32_0 = arith.constant 0 : i32
    return %arg1, %arg0, %c0_i32 : i32, i32, i32
  }
  func.func @transform_2(%arg0: i32, %arg1: i32) -> (i32, i32, i32) {
    %c0_i32 = arith.constant 0 : i32
    %c0_i32_0 = arith.constant 0 : i32
    %c0_i32_1 = arith.constant 0 : i32
    return %c0_i32, %arg0, %c0_i32_0 : i32, i32, i32
  }
  func.func @transform_3(%arg0: i32, %arg1: i32) -> (i32, i32) {
    %c0_i32 = arith.constant 0 : i32
    %c0_i32_0 = arith.constant 0 : i32
    %c0_i32_1 = arith.constant 0 : i32
    return %c0_i32, %c0_i32_0 : i32, i32
  }
  func.func @transform_4(%arg0: i32, %arg1: i32) -> (i32, i32, i32) {
    %c0_i32 = arith.constant 0 : i32
    %c0_i32_0 = arith.constant 0 : i32
    %c0_i32_1 = arith.constant 0 : i32
    return %arg0, %c0_i32, %c0_i32_0 : i32, i32, i32
  }
  func.func @transform_5(%arg0: i32, %arg1: i32) -> (i32, i32, i32) {
    %c0_i32 = arith.constant 0 : i32
    %c0_i32_0 = arith.constant 0 : i32
    %c0_i32_1 = arith.constant 0 : i32
    return %arg0, %c0_i32, %c0_i32_0 : i32, i32, i32
  }
}

</mosaic_0001>

<llo_original>
// kernel: tpu_custom_call.1
$region0: #{tpu_custom_call.1}
  #allocation0 [shape = 'u32[]', space=smem, size = 0x4, offset = 0x4, fixed_abs, tag = 'smem constant byte address 0x4 - core index']
  #allocation1 [shape = 'u32[72,128]{1,0:T(1,128)}', space=vmem, size = 0x9000, scoped, tag = 'internal scratch']
  #allocation2 [shape = 'f32[2,8,256]{2,1,0:T(8,128)}', space=vmem, size = 0x4000, scoped, tag = 'scratch operand']
  #allocation3 [shape = 'f32[8,256]{1,0:T(8,128)}', space=vmem, size = 0x2000, scoped, tag = 'scratch operand']
  %s0 = inlined_call_operand.hbm [shape: f32[2], index: 0, kind: input, shape index: {}]
  %s1 = inlined_call_operand.hbm [shape: f32[4,16,256], index: 1, kind: input, shape index: {}]
  %s2 = inlined_call_operand.hbm [shape: f32[2,16,256], index: 2, kind: input, shape index: {}]
  %s3 = inlined_call_operand.vmem [shape: f32[1,256], index: 3, kind: input, shape index: {}]
  %s4 = inlined_call_operand.hbm [shape: f32[2,1,128], index: 4, kind: output, shape index: {0}]
  %s5 = inlined_call_operand.hbm [shape: f32[2,1,256], index: 5, kind: output, shape index: {1}]
  %6 = xla_tuple %s4, %s5
  %s7 = sld [smem:[#allocation0]]
  $region81: #{tpu_custom_call.1} parent=0
    _
  %s9 = ssub.s32 1, %s7
  %s10 = scalar_select 0, %s9, %s7
  $region1: #{tpu_custom_call.1} parent=0
    #allocation4 [shape = 'u8[512]{0}', space=smem, size = 0x200, scoped, tag = 'input window, operand 0, single buffered']
    #allocation5 [shape = 's32[2]{0}', space=sflag, size = 0x8, scoped, tag = 'scoped memory for tpu_custom_call.1']
    #allocation6 [shape = 's32[2]{0}', space=sflag, size = 0x8, scoped, tag = 'scoped memory for tpu_custom_call.1']
    #allocation7 [shape = 's32[2]{0}', space=sflag, size = 0x8, scoped, tag = 'scoped memory for tpu_custom_call.1']
    #allocation8 [shape = 'u8[16384]{0}', space=vmem, size = 0x4000, scoped, tag = 'input window, operand 1']
    #allocation9 [shape = 'u8[32768]{0}', space=vmem, size = 0x8000, scoped, tag = 'input window, operand 2']
    #allocation10 [shape = 's32[2]{0}', space=sflag, size = 0x8, scoped, tag = 'scoped memory for tpu_custom_call.1']
    #allocation11 [shape = 'u8[1024]{0}', space=vmem, size = 0x400, scoped, tag = 'output window, operand 0']
    #allocation12 [shape = 'u8[2048]{0}', space=vmem, size = 0x800, scoped, tag = 'output window, operand 1']
    #allocation13 [shape = 's32[2]{0}', space=sflag, size = 0x8, scoped, tag = 'scoped memory for tpu_custom_call.1']
    %11 = vsyncpa [#allocation7], 0
    %12 = vsyncpa [#allocation5], 0
    %s13 = scalar_lea.sflag [#allocation5], 1
    %14 = vsyncpa %s13, 0
    %15 = vsyncpa [#allocation10], 0
    %s16 = scalar_lea.sflag [#allocation10], 1
    %17 = vsyncpa %s16, 0
    %18 = vsyncpa [#allocation6], 0
    %s19 = scalar_lea.sflag [#allocation6], 1
    %20 = vsyncpa %s19, 0
    %21 = vsyncpa [#allocation13], 0
    %s22 = scalar_lea.sflag [#allocation13], 1
    %23 = vsyncpa %s22, 0
    loop: start=0, step=1, limit=10
    $region2: #{tpu_custom_call.1} parent=1 // loop_pre_header
      _
    $region3: #{tpu_custom_call.1} parent=1 // loop_header
      %s25 = sphi 0, %s29
      %p26 = scmp.ge.s32.totalorder %s25, 10
      %s32 = sphi 0, %s44
      %s33 = sphi 0, %s40
      %s34 = sphi 0, %s32
      %s35 = sphi 0, %s33
      %s36 = sphi 0, %s34
      %s37 = sphi 0, %s35
      %s45 = sphi 0, %s45
      %s47 = sphi 0, %s45
      %s48 = sphi 0, %s47
      %s62 = sphi 0, %s48
      %s70 = sphi 0, %s72
      %s73 = sphi 0, %s70
      %s74 = sphi 0, %s73
      %s90 = sphi 0, %s74
      %s96 = sphi 0, %s98
      %s99 = sphi 0, %s96
      %s100 = sphi 0, %s99
      %s116 = sphi 0, %s100
      %s120 = sphi 0, %s120
      %s122 = sphi 0, %s120
      %s123 = sphi 0, %s122
      %s137 = sphi 0, %s123
      %s143 = sphi 0, %s145
      %s146 = sphi 0, %s143
      %s147 = sphi 0, %s146
      %s163 = sphi 0, %s147
      %s169 = sphi 0, %s171
      %s172 = sphi 0, %s169
      %s173 = sphi 0, %s172
      %s189 = sphi 0, %s173
    $region4: #{tpu_custom_call.1} parent=1 // loop_header_branch
      %28 = sbr.rel (%p26) target = $region8
    $region5: #{tpu_custom_call.1} parent=1 // loop_body
      %s30 = ssub.s32 %s25, 1
      %s31 = ssub.s32 %s25, 2
      %s38 = sadd.s32 1, %s33
      %p39 = scmp.ge.s32.totalorder %s38, 4
      %s40 = scalar_select %p39, 0, %s38
      %s41 = sadd.s32 1, %s32
      %s42 = scalar_select %p39, %s41, %s32
      %p43 = scmp.ge.s32.totalorder %s42, 2
      %s44 = scalar_select %p43, 0, %s42
      %s46 = sadd.s32 %s45, 1
      %p49 = scmp.eq.s32.totalorder %s25, 7
      %p50 = scmp.ne.s32.totalorder %s45, %s47
      %p51 = scmp.eq.s32.totalorder %s25, 0
      %p52 = por %p50, %p51
      %p53 = scmp.ne.s32.totalorder %s45, %s47
      %p54 = scmp.eq.s32.totalorder %s30, 7
      %p55 = por %p53, %p54
      %p56 = scmp.ne.s32.totalorder %s47, %s48
      %p57 = scmp.eq.s32.totalorder %s30, 0
      %p58 = por %p56, %p57
      %p59 = scmp.ne.s32.totalorder %s47, %s48
      %p60 = scmp.eq.s32.totalorder %s31, 7
      %p61 = por %p59, %p60
      %p63 = scmp.ne.s32.totalorder %s48, %s62
      %p64 = scmp.eq.s32.totalorder %s31, 0
      %p65 = por %p63, %p64
      %s66 = ssub.s32 %s33, %s40
      %s67 = ssub.s32 %s32, %s44
      %s68 = sor.u32 %s66, %s67
      %p69 = scmp.eq.s32.totalorder %s68, 0
      %s71 = sadd.s32 %s70, 1
      %s72 = scalar_select %p69, %s70, %s71
      %p75 = pneg %p69
      %p76 = scmp.eq.s32.totalorder %s25, 7
      %p77 = por %p75, %p76
      %p78 = scmp.ne.s32.totalorder %s70, %s73
      %p79 = scmp.eq.s32.totalorder %s25, 0
      %p80 = por %p78, %p79
      %p81 = scmp.ne.s32.totalorder %s70, %s73
      %p82 = scmp.eq.s32.totalorder %s30, 7
      %p83 = por %p81, %p82
      %p84 = scmp.ne.s32.totalorder %s73, %s74
      %p85 = scmp.eq.s32.totalorder %s30, 0
      %p86 = por %p84, %p85
      %p87 = scmp.ne.s32.totalorder %s73, %s74
      %p88 = scmp.eq.s32.totalorder %s31, 7
      %p89 = por %p87, %p88
      %p91 = scmp.ne.s32.totalorder %s74, %s90
      %p92 = scmp.eq.s32.totalorder %s31, 0
      %p93 = por %p91, %p92
      %s94 = ssub.s32 %s32, %s44
      %p95 = scmp.eq.s32.totalorder %s94, 0
      %s97 = sadd.s32 %s96, 1
      %s98 = scalar_select %p95, %s96, %s97
      %p101 = pneg %p95
      %p102 = scmp.eq.s32.totalorder %s25, 7
      %p103 = por %p101, %p102
      %p104 = scmp.ne.s32.totalorder %s96, %s99
      %p105 = scmp.eq.s32.totalorder %s25, 0
      %p106 = por %p104, %p105
      %p107 = scmp.ne.s32.totalorder %s96, %s99
      %p108 = scmp.eq.s32.totalorder %s30, 7
      %p109 = por %p107, %p108
      %p110 = scmp.ne.s32.totalorder %s99, %s100
      %p111 = scmp.eq.s32.totalorder %s30, 0
      %p112 = por %p110, %p111
      %p113 = scmp.ne.s32.totalorder %s99, %s100
      %p114 = scmp.eq.s32.totalorder %s31, 7
      %p115 = por %p113, %p114
      %p117 = scmp.ne.s32.totalorder %s100, %s116
      %p118 = scmp.eq.s32.totalorder %s31, 0
      %p119 = por %p117, %p118
      %s121 = sadd.s32 %s120, 1
      %p124 = scmp.eq.s32.totalorder %s25, 7
      %p125 = scmp.ne.s32.totalorder %s120, %s122
      %p126 = scmp.eq.s32.totalorder %s25, 0
      %p127 = por %p125, %p126
      %p128 = scmp.ne.s32.totalorder %s120, %s122
      %p129 = scmp.eq.s32.totalorder %s30, 7
      %p130 = por %p128, %p129
      %p131 = scmp.ne.s32.totalorder %s122, %s123
      %p132 = scmp.eq.s32.totalorder %s30, 0
      %p133 = por %p131, %p132
      %p134 = scmp.ne.s32.totalorder %s122, %s123
      %p135 = scmp.eq.s32.totalorder %s31, 7
      %p136 = por %p134, %p135
      %p138 = scmp.ne.s32.totalorder %s123, %s137
      %p139 = scmp.eq.s32.totalorder %s31, 0
      %p140 = por %p138, %p139
      %s141 = ssub.s32 %s32, %s44
      %p142 = scmp.eq.s32.totalorder %s141, 0
      %s144 = sadd.s32 %s143, 1
      %s145 = scalar_select %p142, %s143, %s144
      %p148 = pneg %p142
      %p149 = scmp.eq.s32.totalorder %s25, 7
      %p150 = por %p148, %p149
      %p151 = scmp.ne.s32.totalorder %s143, %s146
      %p152 = scmp.eq.s32.totalorder %s25, 0
      %p153 = por %p151, %p152
      %p154 = scmp.ne.s32.totalorder %s143, %s146
      %p155 = scmp.eq.s32.totalorder %s30, 7
      %p156 = por %p154, %p155
      %p157 = scmp.ne.s32.totalorder %s146, %s147
      %p158 = scmp.eq.s32.totalorder %s30, 0
      %p159 = por %p157, %p158
      %p160 = scmp.ne.s32.totalorder %s146, %s147
      %p161 = scmp.eq.s32.totalorder %s31, 7
      %p162 = por %p160, %p161
      %p164 = scmp.ne.s32.totalorder %s147, %s163
      %p165 = scmp.eq.s32.totalorder %s31, 0
      %p166 = por %p164, %p165
      %s167 = ssub.s32 %s32, %s44
      %p168 = scmp.eq.s32.totalorder %s167, 0
      %s170 = sadd.s32 %s169, 1
      %s171 = scalar_select %p168, %s169, %s170
      %p174 = pneg %p168
      %p175 = scmp.eq.s32.totalorder %s25, 7
      %p176 = por %p174, %p175
      %p177 = scmp.ne.s32.totalorder %s169, %s172
      %p178 = scmp.eq.s32.totalorder %s25, 0
      %p179 = por %p177, %p178
      %p180 = scmp.ne.s32.totalorder %s169, %s172
      %p181 = scmp.eq.s32.totalorder %s30, 7
      %p182 = por %p180, %p181
      %p183 = scmp.ne.s32.totalorder %s172, %s173
      %p184 = scmp.eq.s32.totalorder %s30, 0
      %p185 = por %p183, %p184
      %p186 = scmp.ne.s32.totalorder %s172, %s173
      %p187 = scmp.eq.s32.totalorder %s31, 7
      %p188 = por %p186, %p187
      %p190 = scmp.ne.s32.totalorder %s173, %s189
      %p191 = scmp.eq.s32.totalorder %s31, 0
      %p192 = por %p190, %p191
      %p193 = scmp.le.s32.totalorder 1, %s25
      %p194 = scmp.lt.s32.totalorder %s25, 9
      %p195 = pnand %p193, %p194
      %p196 = pneg %p195
      // Predicated region
      $region9: #{tpu_custom_call.1} parent=5 // pred_check
        _
      $region10: #{tpu_custom_call.1} parent=5 // pred_check_branch
        %198 = sbr.rel (%p195) target = $region12
      $region11: #{tpu_custom_call.1} parent=5 // pred_region
        %s199 = ssub.s32 %s25, 1
        // Predicated region
        $region13: #{tpu_custom_call.1} parent=11 // pred_check
          %p200 = pneg %p58
        $region14: #{tpu_custom_call.1} parent=11 // pred_check_branch
          %202 = sbr.rel (%p200) target = $region16
        $region15: #{tpu_custom_call.1} parent=11 // pred_region
          %204 = vsyncadd [#allocation7], 0
          %s206 = sshll.u32 %s0, 4
          %s207 = int_to_ptr.hbm [resolvable:$true] %s206
          %209 = dma.hbm_to_smem %s207, 16, [#allocation4], [#allocation7]
        $region16: #{tpu_custom_call.1} parent=11 // pred_fallthru
          _
        // Predicated region
        $region17: #{tpu_custom_call.1} parent=11 // pred_check
          %p210 = pneg %p133
        $region18: #{tpu_custom_call.1} parent=11 // pred_check_branch
          %212 = sbr.rel (%p210) target = $region20
        $region19: #{tpu_custom_call.1} parent=11 // pred_region
          _
        $region20: #{tpu_custom_call.1} parent=11 // pred_fallthru
          _
      $region12: #{tpu_custom_call.1} parent=5 // pred_fallthru
        _
      %p213 = scmp.lt.s32.totalorder %s25, 8
      // Predicated region
      $region21: #{tpu_custom_call.1} parent=5 // pred_check
        %p214 = pneg %p213
      $region22: #{tpu_custom_call.1} parent=5 // pred_check_branch
        %216 = sbr.rel (%p214) target = $region24
      $region23: #{tpu_custom_call.1} parent=5 // pred_region
        // Predicated region
        $region25: #{tpu_custom_call.1} parent=23 // pred_check
          %p217 = pneg %p80
        $region26: #{tpu_custom_call.1} parent=23 // pred_check_branch
          %219 = sbr.rel (%p217) target = $region28
        $region27: #{tpu_custom_call.1} parent=23 // pred_region
          %s220 = sand.u32 %s70, 1
          %s221 = scalar_lea.sflag [#allocation5], %s220
          %s222 = sand.u32 %s70, 1
          %s223 = smul.addr %s222, 16
          %s224 = scalar_lea.vmem [#allocation8], %s223
          %226 = vsyncadd %s221, 0
          %s227 = smul.addr %s32, 2
          %s228 = smul.addr %s33, 4
          %s229 = sadd.s32 %s227, %s228
          %s230 = smul.addr %s229, 8
          %s231 = scalar_lea.hbm %s1, %s230
          %s233 = sshll.u32 %s231, 4
          %s234 = int_to_ptr.hbm [resolvable:$true] %s233
          %s235 = sshll.u32 %s224, 4
          %s236 = int_to_ptr.vmem [resolvable:$true] %s235
          %238 = dma.hbm_to_vmem [thread:$0]  %s234, 256, %s236, %s221
        $region28: #{tpu_custom_call.1} parent=23 // pred_fallthru
          _
        // Predicated region
        $region29: #{tpu_custom_call.1} parent=23 // pred_check
          %p239 = pneg %p106
        $region30: #{tpu_custom_call.1} parent=23 // pred_check_branch
          %241 = sbr.rel (%p239) target = $region32
        $region31: #{tpu_custom_call.1} parent=23 // pred_region
          %s242 = sand.u32 %s96, 1
          %s243 = scalar_lea.sflag [#allocation10], %s242
          %s244 = sand.u32 %s96, 1
          %s245 = smul.addr %s244, 32
          %s246 = scalar_lea.vmem [#allocation9], %s245
          %248 = vsyncadd %s243, 0
          %s249 = smul.addr %s32, 2
          %s250 = smul.addr %s249, 8
          %s251 = scalar_lea.hbm %s2, %s250
          %s252 = sshll.u32 %s251, 4
          %s253 = int_to_ptr.hbm [resolvable:$true] %s252
          %s254 = sshll.u32 %s246, 4
          %s255 = int_to_ptr.vmem [resolvable:$true] %s254
          %260 = dma.hbm_to_vmem [thread:$0]  %s253, 512, %s255, %s243, 512, 256, 16
        $region32: #{tpu_custom_call.1} parent=23 // pred_fallthru
          _
      $region24: #{tpu_custom_call.1} parent=5 // pred_fallthru
        _
      %p261 = scmp.le.s32.totalorder 1, %s25
      %p262 = scmp.lt.s32.totalorder %s25, 9
      %p263 = pnand %p261, %p262
      %p264 = pneg %p263
      // Predicated region
      $region33: #{tpu_custom_call.1} parent=5 // pred_check
        _
      $region34: #{tpu_custom_call.1} parent=5 // pred_check_branch
        %266 = sbr.rel (%p263) target = $region36
      $region35: #{tpu_custom_call.1} parent=5 // pred_region
        %s267 = ssub.s32 %s25, 1
        // Predicated region
        $region37: #{tpu_custom_call.1} parent=35 // pred_check
          %p268 = pneg %p58
        $region38: #{tpu_custom_call.1} parent=35 // pred_check_branch
          %270 = sbr.rel (%p268) target = $region40
        $region39: #{tpu_custom_call.1} parent=35 // pred_region
          %272 = dma.done [#allocation7], 16
        $region40: #{tpu_custom_call.1} parent=35 // pred_fallthru
          _
        %s273 = sand.u32 %s73, 1
        %s274 = scalar_lea.sflag [#allocation5], %s273
        %s275 = sand.u32 %s73, 1
        %s276 = smul.addr %s275, 16
        %s277 = scalar_lea.vmem [#allocation8], %s276
        // Predicated region
        $region41: #{tpu_custom_call.1} parent=35 // pred_check
          %p278 = pneg %p86
        $region42: #{tpu_custom_call.1} parent=35 // pred_check_branch
          %280 = sbr.rel (%p278) target = $region44
        $region43: #{tpu_custom_call.1} parent=35 // pred_region
          %282 = dma.done %s274, 256
        $region44: #{tpu_custom_call.1} parent=35 // pred_fallthru
          _
        %s283 = sand.u32 %s99, 1
        %s284 = scalar_lea.sflag [#allocation10], %s283
        %s285 = sand.u32 %s99, 1
        %s286 = smul.addr %s285, 32
        %s287 = scalar_lea.vmem [#allocation9], %s286
        // Predicated region
        $region45: #{tpu_custom_call.1} parent=35 // pred_check
          %p288 = pneg %p112
        $region46: #{tpu_custom_call.1} parent=35 // pred_check_branch
          %290 = sbr.rel (%p288) target = $region48
        $region47: #{tpu_custom_call.1} parent=35 // pred_region
          %292 = dma.done %s284, 512
        $region48: #{tpu_custom_call.1} parent=35 // pred_fallthru
          _
        %293 = sfence
        %p294 = pneg %p58
        %p295 = pneg %p55
        %s296 = sand.u32 %s73, 1
        %s297 = scalar_lea.sflag [#allocation5], %s296
        %s298 = sand.u32 %s73, 1
        %s299 = smul.addr %s298, 16
        %s300 = scalar_lea.vmem [#allocation8], %s299
        %p301 = pneg %p86
        %p302 = pneg %p83
        %s303 = sand.u32 %s99, 1
        %s304 = scalar_lea.sflag [#allocation10], %s303
        %s305 = sand.u32 %s99, 1
        %s306 = smul.addr %s305, 32
        %s307 = scalar_lea.vmem [#allocation9], %s306
        %p308 = pneg %p112
        %p309 = pneg %p109
        %p310 = pneg %p133
        %p311 = pneg %p130
        %p312 = pneg %p159
        %p313 = pneg %p156
        %s314 = sand.u32 %s146, 1
        %s315 = scalar_lea.sflag [#allocation6], %s314
        %s316 = sand.u32 %s146, 1
        %s317 = scalar_lea.vmem [#allocation11], %s316
        %p318 = pneg %p185
        %p319 = pneg %p182
        %s320 = sand.u32 %s172, 1
        %s321 = scalar_lea.sflag [#allocation13], %s320
        %s322 = sand.u32 %s172, 1
        %s323 = smul.addr %s322, 2
        %s324 = scalar_lea.vmem [#allocation12], %s323
        %s325 = sld [smem:[#allocation4]]
        %s326 = sld [smem:[#allocation4 + $0x1]]
        %p327 = scmp.eq.s32.totalorder %s35, 0
        // Predicated region
        $region49: #{tpu_custom_call.1} parent=35 // pred_check
          %p328 = pneg %p327
        $region50: #{tpu_custom_call.1} parent=35 // pred_check_branch
          %330 = sbr.rel (%p328) target = $region52
        $region51: #{tpu_custom_call.1} parent=35 // pred_region
          %v331 = vld [vmem:[%s287] sm:$0xff]
          %v332 = vld [vmem:[%s287 + $0x8] sm:$0xff]
          %v333 = vld [vmem:[%s287 + $0x10] sm:$0xff]
          %v334 = vld [vmem:[%s287 + $0x18] sm:$0xff]
          %v335 = vld [vmem:[%s3] sm:$0x3]
          %v336 = vstv %s326
          %v337 = vmul.f32 %v335, %v336
          %v338 = vmul.f32 %v331, %v336
          %v339 = vmul.f32 %v332, %v336
          %v340 = vmul.f32 %v333, %v336
          %v341 = vmul.f32 %v334, %v336
          %v343 = vperm.slane %v337, 0
          %v344 = vperm.slane %v337, 1
          %v347 = vsub.f32 %v338, %v343
          %v348 = vsub.f32 %v339, %v344
          %v349 = vsub.f32 %v340, %v343
          %v350 = vsub.f32 %v341, %v344
          %v351 = vmax.f32 %v347, %v348
          %352 = vmax.xlane.f32.xlu0 %v351
          %v353 = vpop.xlane.xlu0 %352
          %v354 = vmax.f32 %v349, %v350
          %355 = vmax.xlane.f32.xlu0 %v354
          %v356 = vpop.xlane.xlu0 %355
          %v357 = vsub.f32 %v347, %v353
          %v358 = vsub.f32 %v348, %v353
          %v359 = vsub.f32 %v349, %v356
          %v360 = vsub.f32 %v350, %v356
          %v361 = vmul.f32 %v357, 1.442695
          %v362 = vpow.pop %v361
          %v363 = vmul.f32 %v358, 1.442695
          %v364 = vpow.pop %v363
          %v365 = vmul.f32 %v359, 1.442695
          %v366 = vpow.pop %v365
          %v367 = vmul.f32 %v360, 1.442695
          %v368 = vpow.pop %v367
          %v369 = vadd.f32 %v362, %v364
          %370 = vadd.xlane.f32.xlu0 %v369
          %v371 = vpop.xlane.xlu0 %370
          %v372 = vadd.f32 %v366, %v368
          %373 = vadd.xlane.f32.xlu0 %v372
          %v374 = vpop.xlane.xlu0 %373
          %v375 = vrcp.pop %v371
          %v376 = vmul.f32 %v371, %v375
          %v377 = vsub.f32 1.0, %v376
          %v378 = vmul.f32 %v375, %v377
          %v379 = vadd.f32 %v375, %v378
          %vm380 = vweird.f32 %v371
          %vm381 = vweird.f32 %v375
          %vm382 = vmor %vm380, %vm381
          %v383 = vsel %vm382, %v375, %v379
          %v384 = vand.u32 2147483647, %v371
          %vm385 = vcmp.eq.f32.partialorder %v384, 8.507059e+37
          %v386 = vand.u32 %v371, 2147483648
          %v387 = vor.u32 1.1754944e-38, %v386
          %v388 = vsel %vm385, %v387, %v383
          %v389 = vmul.f32 1.0, %v388
          %v390 = vrcp.pop %v374
          %v391 = vmul.f32 %v374, %v390
          %v392 = vsub.f32 1.0, %v391
          %v393 = vmul.f32 %v390, %v392
          %v394 = vadd.f32 %v390, %v393
          %vm395 = vweird.f32 %v374
          %vm396 = vweird.f32 %v390
          %vm397 = vmor %vm395, %vm396
          %v398 = vsel %vm397, %v390, %v394
          %v399 = vand.u32 2147483647, %v374
          %vm400 = vcmp.eq.f32.partialorder %v399, 8.507059e+37
          %v401 = vand.u32 %v374, 2147483648
          %v402 = vor.u32 1.1754944e-38, %v401
          %v403 = vsel %vm400, %v402, %v398
          %v404 = vmul.f32 1.0, %v403
          %v405 = vmul.f32 %v362, %v389
          %v406 = vmul.f32 %v364, %v389
          %v407 = vmul.f32 %v366, %v404
          %v408 = vmul.f32 %v368, %v404
          %409 = vst [vmem:[#allocation2] sm:$0xff] %v405
          %410 = vst [vmem:[#allocation2 + $0x8] sm:$0xff] %v406
          %411 = vst [vmem:[#allocation2 + $0x10] sm:$0xff] %v407
          %412 = vst [vmem:[#allocation2 + $0x18] sm:$0xff] %v408
          %v413 = vadd.f32 %v405, %v407
          %v414 = vadd.f32 %v406, %v408
          %415 = vst [vmem:[#allocation3] sm:$0xff] %v413
          %416 = vst [vmem:[#allocation3 + $0x8] sm:$0xff] %v414
          %v417 = vadd.f32 %v331, %v333
          %v418 = vadd.f32 %v332, %v334
          %v419 = vrot.slane %v417, 4
          %v420 = vadd.f32 %v417, %v419
          %v421 = vrot.slane %v420, 2
          %v422 = vadd.f32 %v420, %v421
          %v423 = vrot.slane %v422, 1
          %v424 = vadd.f32 %v422, %v423
          %v425 = vrot.slane %v418, 4
          %v426 = vadd.f32 %v418, %v425
          %v427 = vrot.slane %v426, 2
          %v428 = vadd.f32 %v426, %v427
          %v429 = vrot.slane %v428, 1
          %v430 = vadd.f32 %v428, %v429
          %v433 = vrot.slane %v430, 7
          %vm434 = vcmask 1040384
          %v435 = vsel %vm434, %v424, %v433
          %v437 = vlaneseq
          %vm438 = vcmp.ge.s32.totalorder %v437, 0
          %vm439 = vcmp.lt.s32.totalorder %v437, 256
          %vm440 = vmand %vm438, %vm439
          %441 = vst.msk [vmem:[%s324] sm:$0x3] %vm440, %v435
          %442 = vst [vmem:[%s317] sm:$0x1] 0.0
        $region52: #{tpu_custom_call.1} parent=35 // pred_fallthru
          _
        %v443 = vld [vmem:[%s277] sm:$0xff]
        %v444 = vld [vmem:[%s277 + $0x8] sm:$0xff]
        %v445 = vstv %s325
        %v446 = vmul.f32 %v443, %v445
        %v447 = vmul.f32 %v444, %v445
        %v448 = vmax.f32 %v446, %v447
        %449 = vmax.xlane.f32.xlu0 %v448
        %v450 = vpop.xlane.xlu0 %449
        %v451 = vsub.f32 %v446, %v450
        %v452 = vsub.f32 %v447, %v450
        %v453 = vmul.f32 %v451, 1.442695
        %v454 = vpow.pop %v453
        %v455 = vmul.f32 %v452, 1.442695
        %v456 = vpow.pop %v455
        %v457 = vadd.f32 %v454, %v456
        %458 = vadd.xlane.f32.xlu0 %v457
        %v459 = vpop.xlane.xlu0 %458
        %v460 = vlog2.pop %v459
        %v461 = vmul.f32 %v460, 0.6931472
        %v462 = vsub.f32 %v451, %v461
        %v463 = vsub.f32 %v452, %v461
        %v464 = vld [vmem:[%s317] sm:$0x1]
        %v465 = vld [vmem:[#allocation3] sm:$0xff]
        %v466 = vld [vmem:[#allocation3 + $0x8] sm:$0xff]
        %v467 = vmul.f32 %v465, %v462
        %v468 = vmul.f32 %v466, %v463
        %v469 = vadd.f32 %v467, %v468
        %470 = vadd.xlane.f32.xlu0 %v469
        %v471 = vpop.xlane.xlu0 %470
        %v472 = vrot.slane %v471, 4
        %v473 = vadd.f32 %v471, %v472
        %v474 = vrot.slane %v473, 2
        %v475 = vadd.f32 %v473, %v474
        %v476 = vrot.slane %v475, 1
        %v477 = vadd.f32 %v475, %v476
        %s478 = vtos %v477
        %v479 = vstv %s478
        %v480 = vadd.f32 %v464, %v479
        %481 = vst [vmem:[%s317] sm:$0x1] %v480
        // Predicated region
        $region53: #{tpu_custom_call.1} parent=35 // pred_check
          %p482 = pneg %p327
        $region54: #{tpu_custom_call.1} parent=35 // pred_check_branch
          %484 = sbr.rel (%p482) target = $region56
        $region55: #{tpu_custom_call.1} parent=35 // pred_region
          %v485 = vld [vmem:[%s317] sm:$0x1]
          %v486 = vld [vmem:[#allocation2] sm:$0xff]
          %v487 = vld [vmem:[#allocation2 + $0x8] sm:$0xff]
          %v488 = vmul.f32 %v486, %v462
          %v489 = vmul.f32 %v487, %v463
          %v490 = vadd.f32 %v488, %v489
          %491 = vadd.xlane.f32.xlu0 %v490
          %v492 = vpop.xlane.xlu0 %491
          %v493 = vrot.slane %v492, 4
          %v494 = vadd.f32 %v492, %v493
          %v495 = vrot.slane %v494, 2
          %v496 = vadd.f32 %v494, %v495
          %v497 = vrot.slane %v496, 1
          %v498 = vadd.f32 %v496, %v497
          %s499 = vtos %v498
          %v500 = vstv %s499
          %v501 = vsub.f32 %v485, %v500
          %502 = vst [vmem:[%s317] sm:$0x1] %v501
        $region56: #{tpu_custom_call.1} parent=35 // pred_fallthru
          _
        %p503 = scmp.eq.s32.totalorder %s35, 1
        // Predicated region
        $region57: #{tpu_custom_call.1} parent=35 // pred_check
          %p504 = pneg %p503
        $region58: #{tpu_custom_call.1} parent=35 // pred_check_branch
          %506 = sbr.rel (%p504) target = $region60
        $region59: #{tpu_custom_call.1} parent=35 // pred_region
          %v507 = vld [vmem:[%s317] sm:$0x1]
          %s508 = scalar_lea.vmem [#allocation2], 16
          %v509 = vld [vmem:[%s508] sm:$0xff]
          %v510 = vld [vmem:[%s508 + $0x8] sm:$0xff]
          %v511 = vmul.f32 %v509, %v462
          %v512 = vmul.f32 %v510, %v463
          %v513 = vadd.f32 %v511, %v512
          %514 = vadd.xlane.f32.xlu0 %v513
          %v515 = vpop.xlane.xlu0 %514
          %v516 = vrot.slane %v515, 4
          %v517 = vadd.f32 %v515, %v516
          %v518 = vrot.slane %v517, 2
          %v519 = vadd.f32 %v517, %v518
          %v520 = vrot.slane %v519, 1
          %v521 = vadd.f32 %v519, %v520
          %s522 = vtos %v521
          %v523 = vstv %s522
          %v524 = vsub.f32 %v507, %v523
          %525 = vst [vmem:[%s317] sm:$0x1] %v524
        $region60: #{tpu_custom_call.1} parent=35 // pred_fallthru
          _
        %s526 = sand.u32 %s146, 1
        %s527 = scalar_lea.sflag [#allocation6], %s526
        %s528 = sand.u32 %s146, 1
        %s529 = scalar_lea.vmem [#allocation11], %s528
        %s530 = sand.u32 %s172, 1
        %s531 = scalar_lea.sflag [#allocation13], %s530
        %s532 = sand.u32 %s172, 1
        %s533 = smul.addr %s532, 2
        %s534 = scalar_lea.vmem [#allocation12], %s533
        // Predicated region
        $region61: #{tpu_custom_call.1} parent=35 // pred_check
          %p535 = pneg %p156
        $region62: #{tpu_custom_call.1} parent=35 // pred_check_branch
          %537 = sbr.rel (%p535) target = $region64
        $region63: #{tpu_custom_call.1} parent=35 // pred_region
          %539 = vsyncadd %s527, 0
          %s540 = scalar_lea.hbm %s4, %s34
          %s542 = sshll.u32 %s529, 4
          %s543 = int_to_ptr.vmem [resolvable:$true] %s542
          %s544 = sshll.u32 %s540, 4
          %s545 = int_to_ptr.hbm [resolvable:$true] %s544
          %547 = dma.vmem_to_hbm [thread:$0]  %s543, 16, %s545, %s527
        $region64: #{tpu_custom_call.1} parent=35 // pred_fallthru
          _
        // Predicated region
        $region65: #{tpu_custom_call.1} parent=35 // pred_check
          %p548 = pneg %p182
        $region66: #{tpu_custom_call.1} parent=35 // pred_check_branch
          %550 = sbr.rel (%p548) target = $region68
        $region67: #{tpu_custom_call.1} parent=35 // pred_region
          %552 = vsyncadd %s531, 0
          %s553 = smul.addr %s34, 2
          %s554 = scalar_lea.hbm %s5, %s553
          %s556 = sshll.u32 %s534, 4
          %s557 = int_to_ptr.vmem [resolvable:$true] %s556
          %s558 = sshll.u32 %s554, 4
          %s559 = int_to_ptr.hbm [resolvable:$true] %s558
          %561 = dma.vmem_to_hbm [thread:$0]  %s557, 32, %s559, %s531
        $region68: #{tpu_custom_call.1} parent=35 // pred_fallthru
          _
      $region36: #{tpu_custom_call.1} parent=5 // pred_fallthru
        _
      %p562 = scmp.le.s32.totalorder 2, %s25
      // Predicated region
      $region69: #{tpu_custom_call.1} parent=5 // pred_check
        %p563 = pneg %p562
      $region70: #{tpu_custom_call.1} parent=5 // pred_check_branch
        %565 = sbr.rel (%p563) target = $region72
      $region71: #{tpu_custom_call.1} parent=5 // pred_region
        %s566 = ssub.s32 %s25, 2
        // Predicated region
        $region73: #{tpu_custom_call.1} parent=71 // pred_check
          %p567 = pneg %p162
        $region74: #{tpu_custom_call.1} parent=71 // pred_check_branch
          %569 = sbr.rel (%p567) target = $region76
        $region75: #{tpu_custom_call.1} parent=71 // pred_region
          %s570 = sand.u32 %s147, 1
          %s571 = scalar_lea.sflag [#allocation6], %s570
          %s572 = sand.u32 %s147, 1
          %s573 = scalar_lea.vmem [#allocation11], %s572
          %575 = dma.done %s571, 16
        $region76: #{tpu_custom_call.1} parent=71 // pred_fallthru
          _
        // Predicated region
        $region77: #{tpu_custom_call.1} parent=71 // pred_check
          %p576 = pneg %p188
        $region78: #{tpu_custom_call.1} parent=71 // pred_check_branch
          %578 = sbr.rel (%p576) target = $region80
        $region79: #{tpu_custom_call.1} parent=71 // pred_region
          %s579 = sand.u32 %s173, 1
          %s580 = scalar_lea.sflag [#allocation13], %s579
          %s581 = sand.u32 %s173, 1
          %s582 = smul.addr %s581, 2
          %s583 = scalar_lea.vmem [#allocation12], %s582
          %585 = dma.done %s580, 32
        $region80: #{tpu_custom_call.1} parent=71 // pred_fallthru
          _
      $region72: #{tpu_custom_call.1} parent=5 // pred_fallthru
        _
    $region6: #{tpu_custom_call.1} parent=1 // loop_footer
      %s29 = sadd.s32 1, %s25
    $region7: #{tpu_custom_call.1} parent=1 // loop_footer_branch
      %24 = sbr.rel target = $region3
    $region8: #{tpu_custom_call.1} parent=1 // loop_exit
      _
    %586 = vsyncpa [#allocation5], 1
    %s587 = scalar_lea.sflag [#allocation5], 1
    %588 = vsyncpa %s587, 1
    %589 = vsyncpa [#allocation10], 1
    %s590 = scalar_lea.sflag [#allocation10], 1
    %591 = vsyncpa %s590, 1
    %592 = vsyncpa [#allocation6], 1
    %s593 = scalar_lea.sflag [#allocation6], 1
    %594 = vsyncpa %s593, 1
    %595 = vsyncpa [#allocation13], 1
    %s596 = scalar_lea.sflag [#allocation13], 1
    %597 = vsyncpa %s596, 1
    %598 = vsyncpa [#allocation7], 1
    %s599 = scalar_lea.sflag [#allocation7], 1
    %600 = vsyncpa %s599, 1

</llo_original>
